<compile_context>
chip_gen: v5e
topology: v5e:2x2
jax: 0.10.0
libtpu: 0.0.40
codegen_flags: <defaults>
</compile_context>

<pallas_src>
import functools

import jax
import jax.numpy as jnp
from jax.experimental import pallas as pl
from jax.experimental.pallas import tpu as pltpu


_VMEM_BUDGET = 56 * 1024 * 1024   # stay under v7x's 64 MiB physical VMEM


def _round_up(x, m):
    return ((x + m - 1) // m) * m


def _cdiv(a, b):
    return -(-a // b)


def _core_count():
    """Best-effort TensorCore count (v7x megacore); defaults to 1."""
    try:
        info = pltpu.get_tpu_info()
        for attr in ("num_cores", "core_count", "num_tensorcores"):
            v = getattr(info, attr, None)
            if isinstance(v, int) and v > 0:
                return v
    except Exception:
        pass
    try:
        v = getattr(jax.devices()[0], "num_cores", None)
        if isinstance(v, int) and v > 0:
            return v
    except Exception:
        pass
    return 1


def _residual_kernel(old_ref, new_ref, w1a_ref, w1b_ref, b1_ref, w2_ref, b2_ref,
                     att_ref, wts_ref):
    old = old_ref[...]                                   # (tn, D)
    new = new_ref[...]                                   # (tn, D)

    # hidden = tanh(old @ W1a + new @ W1b + b1): split matmuls instead of a
    # (tn, 2D) lane-concat temporary; both accumulate in f32 on the MXU.
    h = jnp.dot(old, w1a_ref[...], preferred_element_type=jnp.float32)
    h = h + jnp.dot(new, w1b_ref[...], preferred_element_type=jnp.float32)
    h = jnp.tanh(h + b1_ref[...])                        # (tn, H) f32

    w2 = w2_ref[...]                                     # (1, H) f32
    b2 = b2_ref[0, 0]                                    # scalar from SMEM

    # Gate, column form (tn, 1): VPU multiply + XLU lane reduction.  Used for
    # the blend (broadcast over D).  Blend is done fully in f32.
    w_col = jax.nn.sigmoid(jnp.sum(h * w2, axis=-1, keepdims=True) + b2)
    old_f = old.astype(jnp.float32)
    new_f = new.astype(jnp.float32)
    att_ref[...] = (w_col * old_f + (1.0 - w_col) * new_f).astype(att_ref.dtype)

    # Gate, row form (1, tn): tiny w2 @ h^T MXU matmul so the weights tile is
    # written lane-dense (unmasked vst) as a (2, tn) slab.  Recomputing the
    # score is ~1% of the main matmul and avoids a (tn,1)->(1,tn) relayout;
    # row/column forms may differ by f32 ULPs (different reduction order).
    s_row = jax.lax.dot_general(w2, h, (((1,), (1,)), ((), ())),
                                preferred_element_type=jnp.float32) + b2
    w_row = jax.nn.sigmoid(s_row)                        # (1, tn)
    wts_ref[0:1, :] = w_row.astype(wts_ref.dtype)
    wts_ref[1:2, :] = (1.0 - w_row).astype(wts_ref.dtype)


def _choose_block(n_rows, d, h, block_rows, io_bytes, out_bytes):
    """Pick the row tile and the scoped-VMEM limit to request."""
    # Per-row VMEM: double-buffered old/new, attended, wts slab + f32 hidden
    # temporaries (h, tanh, h*w2, ...).
    per_row = 2 * (2 * d * io_bytes + d * out_bytes + 2 * 4) + 4 * h * 4
    resident = (2 * d * h + 2 * h) * 4 * 2 + (1 << 20)   # params (x2 bufs) + slack
    max_block = max(128, ((_VMEM_BUDGET - resident) // per_row) // 128 * 128)

    cap = min(block_rows, max_block)
    cores = _core_count()
    # Megacore (v7x): prefer >= num_cores parallel grid steps once there is
    # enough data that the extra ~0.35us/step is negligible.  Single-TC chips
    # (v5e/v6e) keep the largest tile that fits.
    if cores > 1 and n_rows > 1024 * cores:
        cap = min(cap, _round_up(_cdiv(n_rows, cores), 128))

    if n_rows <= cap:
        block = n_rows                       # block == full dims: always legal
    else:
        block = max(128, (cap // 128) * 128)  # multiple of 128: lane-dense wts

    vmem_limit = max(32 << 20, block * per_row + resident)   # <= _VMEM_BUDGET
    return block, int(vmem_limit)


@functools.partial(jax.jit, static_argnames=("block_rows", "io_dtype"))
def residual_forward(old, new, wa_w, wa_b, va_w, va_b, *, block_rows=8192,
                     io_dtype=None):
    """old, new: (N, D). wa_w: (H, 2D), wa_b: (H,), va_w: (1, H), va_b: (1,).

    Returns (attended (N, D), weights (N, 2)), matching
    Residual.forward(old, new, return_weights=True).

    io_dtype=jnp.bfloat16 narrows HBM traffic for old/new/W1 *and* the attended
    output (arithmetic stays f32); weights stay f32.
    """
    N, D = old.shape
    H = wa_w.shape[0]

    io_dt = jnp.dtype(io_dtype) if io_dtype is not None else jnp.dtype(old.dtype)
    out_dt = io_dt                                   # attended emitted narrow too

    # torch Linear -> row-major layout; W1 pre-split so the kernel never builds
    # the (tn, 2D) concat:  wa([o, n]) == o @ W1a + n @ W1b + wa_b.
    w1 = wa_w.T.astype(io_dt)                        # (2D, H)
    w1a = w1[:D]                                     # (D, H)
    w1b = w1[D:]                                     # (D, H)
    b1 = wa_b.reshape(1, H).astype(jnp.float32)      # (1, H)
    w2 = va_w.reshape(1, H).astype(jnp.float32)      # (1, H)
    b2 = va_b.reshape(1, 1).astype(jnp.float32)      # scalar -> SMEM

    old_k = old.astype(io_dt)
    new_k = new.astype(io_dt)

    block, vmem_limit = _choose_block(N, D, H, block_rows, io_dt.itemsize,
                                      jnp.dtype(out_dt).itemsize)
    grid = (_cdiv(N, block),)

    row_spec = pl.BlockSpec((block, D), lambda i: (i, 0))
    full = lambda shape: pl.BlockSpec(shape, lambda i: (0, 0))

    attended, wts_t = pl.pallas_call(
        _residual_kernel,
        out_shape=(
            jax.ShapeDtypeStruct((N, D), out_dt),
            jax.ShapeDtypeStruct((2, N), jnp.float32),
        ),
        grid_spec=pl.GridSpec(
            grid=grid,
            in_specs=[
                row_spec,                                           # old
                row_spec,                                           # new
                full((D, H)),                                       # W1a
                full((D, H)),                                       # W1b
                full((1, H)),                                       # b1
                full((1, H)),                                       # w2 row
                pl.BlockSpec(memory_space=pltpu.MemorySpace.SMEM),  # b2 scalar
            ],
            out_specs=[
                row_spec,                                           # attended
                pl.BlockSpec((2, block), lambda i: (0, i)),         # [w; 1-w]
            ],
        ),
        compiler_params=pltpu.CompilerParams(
            dimension_semantics=("parallel",),
            vmem_limit_bytes=vmem_limit),
    )(old_k, new_k, w1a, w1b, b1, w2, b2)

    weights = wts_t.T                                # (N, 2) = [w, 1 - w]
    return attended, weights


def _reference(old, new, wa_w, wa_b, va_w, va_b):
    combine = jnp.concatenate([old, new], axis=-1)
    h = jnp.tanh(combine @ wa_w.T + wa_b)
    w = jax.nn.sigmoid(h @ va_w.T + va_b)
    attended = w * old + (1.0 - w) * new
    return attended, jnp.concatenate([w, 1.0 - w], axis=-1)


if __name__ == "__main__":
    key = jax.random.PRNGKey(0)
    k_old, k_new, k_waw, k_wab, k_vaw, k_vab = jax.random.split(key, 6)

    D, H = 32, 128                       # input_size, hidden_size (module default)

    wa_w = jax.random.normal(k_waw, (H, 2 * D), dtype=jnp.float32) * 0.1
    wa_b = jax.random.normal(k_wab, (H,), dtype=jnp.float32) * 0.1
    va_w = jax.random.normal(k_vaw, (1, H), dtype=jnp.float32) * 0.1
    va_b = jax.random.normal(k_vab, (1,), dtype=jnp.float32) * 0.1

    # (n_rows, block_rows, io_dtype, atol/rtol)
    cases = (
        (16, 8192, None, 3e-5),          # single tile, block == full dims
        (300, 128, None, 3e-5),          # multi-step grid with ragged last tile
        (300, 128, jnp.bfloat16, 5e-2),  # bf16 I/O (inputs + attended output)
    )
    for n_rows, brows, io_dt, tol in cases:
        old = jax.random.normal(k_old, (n_rows, D), dtype=jnp.float32)
        new = jax.random.normal(k_new, (n_rows, D), dtype=jnp.float32)

        attended, weights = residual_forward(old, new, wa_w, wa_b, va_w, va_b,
                                             block_rows=brows, io_dtype=io_dt)
        jax.block_until_ready((attended, weights))

        ref_att, ref_wts = _reference(old, new, wa_w, wa_b, va_w, va_b)
        assert attended.shape == (n_rows, D) and weights.shape == (n_rows, 2)
        assert jnp.allclose(attended.astype(jnp.float32), ref_att,
                            atol=tol, rtol=tol)
        assert jnp.allclose(weights.astype(jnp.float32), ref_wts,
                            atol=tol, rtol=tol)

    print("KERNEL_OK")
</pallas_src>

<mosaic_0001>
module attributes {stable_mosaic.version = 11 : i64} {
  func.func @_residual_kernel(%arg0: i32, %arg1: memref<16x32xf32, #tpu.memory_space<vmem>>, %arg2: memref<16x32xf32, #tpu.memory_space<vmem>>, %arg3: memref<32x128xf32, #tpu.memory_space<vmem>>, %arg4: memref<32x128xf32, #tpu.memory_space<vmem>>, %arg5: memref<1x128xf32, #tpu.memory_space<vmem>>, %arg6: memref<1x128xf32, #tpu.memory_space<vmem>>, %arg7: memref<1x1xf32, #tpu.memory_space<smem>>, %arg8: memref<16x32xf32, #tpu.memory_space<vmem>>, %arg9: memref<2x16xf32, #tpu.memory_space<vmem>>) attributes {dimension_semantics = [#tpu.dimension_semantics<parallel>], iteration_bounds = array<i64: 1>, scalar_prefetch = 0 : i64, scratch_operands = 0 : i64, tpu.core_type = #tpu.core_type<tc>, window_params = [{transform_indices = @transform_0, window_bounds = array<i64: 16, 32>}, {transform_indices = @transform_1, window_bounds = array<i64: 16, 32>}, {pipeline_mode = #tpu.pipeline_mode<synchronous>, transform_indices = @transform_2, window_bounds = array<i64: 32, 128>}, {pipeline_mode = #tpu.pipeline_mode<synchronous>, transform_indices = @transform_3, window_bounds = array<i64: 32, 128>}, {pipeline_mode = #tpu.pipeline_mode<synchronous>, transform_indices = @transform_4, window_bounds = array<i64: 1, 128>}, {pipeline_mode = #tpu.pipeline_mode<synchronous>, transform_indices = @transform_5, window_bounds = array<i64: 1, 128>}, {transform_indices = @transform_6, window_bounds = array<i64: 1, 1>}, {transform_indices = @transform_7, window_bounds = array<i64: 16, 32>}, {transform_indices = @transform_8, window_bounds = array<i64: 2, 16>}]} {
    %c0 = arith.constant 0 : index
    %c0_0 = arith.constant 0 : index
    %0 = vector.load %arg1[%c0, %c0_0] : memref<16x32xf32, #tpu.memory_space<vmem>>, vector<16x32xf32>
    %c0_1 = arith.constant 0 : index
    %c0_2 = arith.constant 0 : index
    %1 = vector.load %arg2[%c0_1, %c0_2] : memref<16x32xf32, #tpu.memory_space<vmem>>, vector<16x32xf32>
    %c0_3 = arith.constant 0 : index
    %c0_4 = arith.constant 0 : index
    %2 = vector.load %arg3[%c0_3, %c0_4] : memref<32x128xf32, #tpu.memory_space<vmem>>, vector<32x128xf32>
    %cst = arith.constant dense<0.000000e+00> : vector<16x128xf32>
    %3 = tpu.matmul %0, %2, %cst {dimension_numbers = #tpu.dot_dimension_numbers<[1], [0], [0], [1], [0, 0, 1, 1], [], []>} : vector<16x32xf32>, vector<32x128xf32>, vector<16x128xf32> -> vector<16x128xf32>
    %c0_5 = arith.constant 0 : index
    %c0_6 = arith.constant 0 : index
    %4 = vector.load %arg4[%c0_5, %c0_6] : memref<32x128xf32, #tpu.memory_space<vmem>>, vector<32x128xf32>
    %cst_7 = arith.constant dense<0.000000e+00> : vector<16x128xf32>
    %5 = tpu.matmul %1, %4, %cst_7 {dimension_numbers = #tpu.dot_dimension_numbers<[1], [0], [0], [1], [0, 0, 1, 1], [], []>} : vector<16x32xf32>, vector<32x128xf32>, vector<16x128xf32> -> vector<16x128xf32>
    %6 = arith.addf %3, %5 : vector<16x128xf32>
    %c0_8 = arith.constant 0 : index
    %c0_9 = arith.constant 0 : index
    %7 = vector.load %arg5[%c0_8, %c0_9] : memref<1x128xf32, #tpu.memory_space<vmem>>, vector<1x128xf32>
    %8 = vector.broadcast %7 : vector<1x128xf32> to vector<16x128xf32>
    %9 = arith.addf %6, %8 : vector<16x128xf32>
    %10 = math.tanh %9 : vector<16x128xf32>
    %c0_10 = arith.constant 0 : index
    %c0_11 = arith.constant 0 : index
    %11 = vector.load %arg6[%c0_10, %c0_11] : memref<1x128xf32, #tpu.memory_space<vmem>>, vector<1x128xf32>
    %c0_12 = arith.constant 0 : index
    %c0_13 = arith.constant 0 : index
    %12 = memref.load %arg7[%c0_12, %c0_13] : memref<1x1xf32, #tpu.memory_space<smem>>
    %13 = vector.broadcast %11 : vector<1x128xf32> to vector<16x128xf32>
    %14 = arith.mulf %10, %13 : vector<16x128xf32>
    %cst_14 = arith.constant dense<0.000000e+00> : vector<16xf32>
    %15 = vector.multi_reduction <add>, %14, %cst_14 [1] : vector<16x128xf32> to vector<16xf32>
    %16 = vector.shape_cast %15 : vector<16xf32> to vector<16x1xf32>
    %17 = vector.broadcast %12 : f32 to vector<16x1xf32>
    %18 = arith.addf %16, %17 : vector<16x1xf32>
    %19 = arith.negf %18 : vector<16x1xf32>
    %20 = math.exp %19 : vector<16x1xf32>
    %cst_15 = arith.constant 1.000000e+00 : f32
    %21 = vector.broadcast %cst_15 : f32 to vector<16x1xf32>
    %22 = arith.addf %21, %20 : vector<16x1xf32>
    %23 = arith.divf %21, %22 : vector<16x1xf32>
    %24 = vector.broadcast %23 : vector<16x1xf32> to vector<16x32xf32>
    %25 = arith.mulf %24, %0 : vector<16x32xf32>
    %cst_16 = arith.constant 1.000000e+00 : f32
    %26 = vector.broadcast %cst_16 : f32 to vector<16x1xf32>
    %27 = arith.subf %26, %23 : vector<16x1xf32>
    %28 = vector.broadcast %27 : vector<16x1xf32> to vector<16x32xf32>
    %29 = arith.mulf %28, %1 : vector<16x32xf32>
    %30 = arith.addf %25, %29 : vector<16x32xf32>
    %c0_17 = arith.constant 0 : index
    %c0_18 = arith.constant 0 : index
    %31 = vector.load %arg8[%c0_17, %c0_18] : memref<16x32xf32, #tpu.memory_space<vmem>>, vector<16x32xf32>
    tpu.vector_store %arg8[%c0_17, %c0_18], %30 {strides = array<i32>} : memref<16x32xf32, #tpu.memory_space<vmem>>, vector<16x32xf32>,
    %cst_19 = arith.constant dense<0.000000e+00> : vector<1x16xf32>
    %32 = tpu.matmul %11, %10, %cst_19 {dimension_numbers = #tpu.dot_dimension_numbers<[1], [1], [0], [0], [0, 0, 1, 0], [], []>} : vector<1x128xf32>, vector<16x128xf32>, vector<1x16xf32> -> vector<1x16xf32>
    %33 = vector.broadcast %12 : f32 to vector<1x16xf32>
    %34 = arith.addf %32, %33 : vector<1x16xf32>
    %35 = arith.negf %34 : vector<1x16xf32>
    %36 = math.exp %35 : vector<1x16xf32>
    %cst_20 = arith.constant 1.000000e+00 : f32
    %37 = vector.broadcast %cst_20 : f32 to vector<1x16xf32>
    %38 = arith.addf %37, %36 : vector<1x16xf32>
    %39 = arith.divf %37, %38 : vector<1x16xf32>
    %c0_21 = arith.constant 0 : index
    %c0_22 = arith.constant 0 : index
    %40 = vector.load %arg9[%c0_21, %c0_22] : memref<2x16xf32, #tpu.memory_space<vmem>>, vector<1x16xf32>
    tpu.vector_store %arg9[%c0_21, %c0_22], %39 {strides = array<i32>} : memref<2x16xf32, #tpu.memory_space<vmem>>, vector<1x16xf32>,
    %cst_23 = arith.constant 1.000000e+00 : f32
    %41 = vector.broadcast %cst_23 : f32 to vector<1x16xf32>
    %42 = arith.subf %41, %39 : vector<1x16xf32>
    %c1 = arith.constant 1 : index
    %c0_24 = arith.constant 0 : index
    %43 = vector.load %arg9[%c1, %c0_24] : memref<2x16xf32, #tpu.memory_space<vmem>>, vector<1x16xf32>
    tpu.vector_store %arg9[%c1, %c0_24], %42 {strides = array<i32>} : memref<2x16xf32, #tpu.memory_space<vmem>>, vector<1x16xf32>,
    return
  }
  func.func @transform_0(%arg0: i32) -> (i32, i32) {
    %c0_i32 = arith.constant 0 : i32
    %c0_i32_0 = arith.constant 0 : i32
    return %arg0, %c0_i32 : i32, i32
  }
  func.func @transform_1(%arg0: i32) -> (i32, i32) {
    %c0_i32 = arith.constant 0 : i32
    %c0_i32_0 = arith.constant 0 : i32
    return %arg0, %c0_i32 : i32, i32
  }
  func.func @transform_2(%arg0: i32) -> (i32, i32) {
    %c0_i32 = arith.constant 0 : i32
    %c0_i32_0 = arith.constant 0 : i32
    %c0_i32_1 = arith.constant 0 : i32
    return %c0_i32, %c0_i32_0 : i32, i32
  }
  func.func @transform_3(%arg0: i32) -> (i32, i32) {
    %c0_i32 = arith.constant 0 : i32
    %c0_i32_0 = arith.constant 0 : i32
    %c0_i32_1 = arith.constant 0 : i32
    return %c0_i32, %c0_i32_0 : i32, i32
  }
  func.func @transform_4(%arg0: i32) -> (i32, i32) {
    %c0_i32 = arith.constant 0 : i32
    %c0_i32_0 = arith.constant 0 : i32
    %c0_i32_1 = arith.constant 0 : i32
    return %c0_i32, %c0_i32_0 : i32, i32
  }
  func.func @transform_5(%arg0: i32) -> (i32, i32) {
    %c0_i32 = arith.constant 0 : i32
    %c0_i32_0 = arith.constant 0 : i32
    %c0_i32_1 = arith.constant 0 : i32
    return %c0_i32, %c0_i32_0 : i32, i32
  }
  func.func @transform_6(%arg0: i32) -> (i32, i32) {
    %c0_i32 = arith.constant 0 : i32
    %c0_i32_0 = arith.constant 0 : i32
    %c0_i32_1 = arith.constant 0 : i32
    return %c0_i32, %c0_i32_0 : i32, i32
  }
  func.func @transform_7(%arg0: i32) -> (i32, i32) {
    %c0_i32 = arith.constant 0 : i32
    %c0_i32_0 = arith.constant 0 : i32
    return %arg0, %c0_i32 : i32, i32
  }
  func.func @transform_8(%arg0: i32) -> (i32, i32) {
    %c0_i32 = arith.constant 0 : i32
    %c0_i32_0 = arith.constant 0 : i32
    return %c0_i32, %arg0 : i32, i32
  }
}

</mosaic_0001>

<llo_original>
// kernel: residual_forward.1
$region0: #{residual_forward.1}
  #allocation0 [shape = 'u32[]', space=smem, size = 0x4, offset = 0x4, fixed_abs, tag = 'smem constant byte address 0x4 - core index']
  #allocation1 [shape = 'u32[72,128]{1,0:T(1,128)}', space=vmem, size = 0x9000, scoped, tag = 'internal scratch']
  #allocation2 [shape = 'f32[1,1]{1,0:T(1,128)S(6)}', space=smem, size = 0x200, scoped, tag = 'scoped memory for residual_forward.1']
  %s0 = inlined_call_operand.vmem [shape: f32[16,32], index: 0, kind: input, shape index: {}]
  %s1 = inlined_call_operand.vmem [shape: f32[16,32], index: 1, kind: input, shape index: {}]
  %s2 = inlined_call_operand.vmem [shape: f32[32,128], index: 2, kind: input, shape index: {}]
  %s3 = inlined_call_operand.vmem [shape: f32[32,128], index: 3, kind: input, shape index: {}]
  %s4 = inlined_call_operand.vmem [shape: f32[1,128], index: 4, kind: input, shape index: {}]
  %s5 = inlined_call_operand.vmem [shape: f32[1,128], index: 5, kind: input, shape index: {}]
  %s6 = inlined_call_operand.<no memory space> [shape: f32[1,1], index: 6, kind: input, shape index: {}]
  %s7 = inlined_call_operand.hbm [shape: f32[16,32], index: 7, kind: output, shape index: {0}]
  %s8 = inlined_call_operand.hbm [shape: f32[2,16], index: 8, kind: output, shape index: {1}]
  %9 = xla_tuple %s7, %s8
  %s10 = sld [smem:[#allocation0]]
  $region46: #{residual_forward.1} parent=0
    _
  %s12 = ssub.s32 1, %s10
  %s13 = scalar_select 0, %s12, %s10
  %14 = sst [smem:[#allocation2]] %s6
  $region1: #{residual_forward.1} parent=0
    #allocation3 [shape = 'u8[8192]{0}', space=vmem, size = 0x2000, scoped, tag = 'output window, operand 0, single buffered']
    #allocation4 [shape = 's32[1]{0}', space=sflag, size = 0x4, scoped, tag = 'scoped memory for residual_forward.1']
    #allocation5 [shape = 'u8[1024]{0}', space=vmem, size = 0x400, scoped, tag = 'output window, operand 1, single buffered']
    #allocation6 [shape = 's32[1]{0}', space=sflag, size = 0x4, scoped, tag = 'scoped memory for residual_forward.1']
    %15 = vsyncpa [#allocation4], 0
    %16 = vsyncpa [#allocation6], 0
    // Predicated region
    $region2: #{residual_forward.1} parent=1 // pred_check
      _
    $region3: #{residual_forward.1} parent=1 // pred_check_branch
      %18 = sbr.rel (0) target = $region5
    $region4: #{residual_forward.1} parent=1 // pred_region
      _
    $region5: #{residual_forward.1} parent=1 // pred_fallthru
      _
    // Predicated region
    $region6: #{residual_forward.1} parent=1 // pred_check
      _
    $region7: #{residual_forward.1} parent=1 // pred_check_branch
      %20 = sbr.rel (0) target = $region9
    $region8: #{residual_forward.1} parent=1 // pred_region
      _
    $region9: #{residual_forward.1} parent=1 // pred_fallthru
      _
    // Predicated region
    $region10: #{residual_forward.1} parent=1 // pred_check
      _
    $region11: #{residual_forward.1} parent=1 // pred_check_branch
      %22 = sbr.rel (0) target = $region13
    $region12: #{residual_forward.1} parent=1 // pred_region
      _
    $region13: #{residual_forward.1} parent=1 // pred_fallthru
      _
    // Predicated region
    $region14: #{residual_forward.1} parent=1 // pred_check
      _
    $region15: #{residual_forward.1} parent=1 // pred_check_branch
      %24 = sbr.rel (0) target = $region17
    $region16: #{residual_forward.1} parent=1 // pred_region
      _
    $region17: #{residual_forward.1} parent=1 // pred_fallthru
      _
    // Predicated region
    $region18: #{residual_forward.1} parent=1 // pred_check
      _
    $region19: #{residual_forward.1} parent=1 // pred_check_branch
      %26 = sbr.rel (0) target = $region21
    $region20: #{residual_forward.1} parent=1 // pred_region
      _
    $region21: #{residual_forward.1} parent=1 // pred_fallthru
      _
    // Predicated region
    $region22: #{residual_forward.1} parent=1 // pred_check
      _
    $region23: #{residual_forward.1} parent=1 // pred_check_branch
      %28 = sbr.rel (0) target = $region25
    $region24: #{residual_forward.1} parent=1 // pred_region
      _
    $region25: #{residual_forward.1} parent=1 // pred_fallthru
      _
    // Predicated region
    $region26: #{residual_forward.1} parent=1 // pred_check
      _
    $region27: #{residual_forward.1} parent=1 // pred_check_branch
      %30 = sbr.rel (0) target = $region29
    $region28: #{residual_forward.1} parent=1 // pred_region
      _
    $region29: #{residual_forward.1} parent=1 // pred_fallthru
      _
    %v31 = vld [vmem:[%s0] sm:$0xff]
    %v32 = vld [vmem:[%s0 + $0x8] sm:$0xff]
    %v33 = vld [vmem:[%s1] sm:$0xff]
    %v34 = vld [vmem:[%s1 + $0x8] sm:$0xff]
    %v35 = vld [vmem:[%s2] sm:$0xff]
    %v36 = vld [vmem:[%s2 + $0x8] sm:$0xff]
    %v37 = vld [vmem:[%s2 + $0x10] sm:$0xff]
    %v38 = vld [vmem:[%s2 + $0x18] sm:$0xff]
    %v39 = vld [vmem:[%s3] sm:$0xff]
    %v40 = vld [vmem:[%s3 + $0x8] sm:$0xff]
    %v41 = vld [vmem:[%s3 + $0x10] sm:$0xff]
    %v42 = vld [vmem:[%s3 + $0x18] sm:$0xff]
    %vm43 = vcmask 261120
    %v45 = vsel %vm43, %v33, 0
    %v48 = vsel %vm43, %v34, 0
    %50 = vmatpush.msra.mxu0 0.0
    %51 = vmatpush.msra.mxu0 0.0
    %52 = vmatpush.msra.mxu0 0.0
    %53 = vmatpush.msra.mxu0 0.0
    %54 = vmatpush.msra.mxu0 0.0
    %55 = vmatpush.msra.mxu0 0.0
    %56 = vmatpush.msra.mxu0 0.0
    %57 = vmatpush.msra.mxu0 0.0
    %58 = vmatpush.msra.mxu0 0.0
    %59 = vmatpush.msra.mxu0 0.0
    %60 = vmatpush.msra.mxu0 0.0
    %61 = vmatpush.msra.mxu0 0.0
    %62 = vmatpush.msra.mxu0 %v42
    %63 = vmatpush.msra.mxu0 %v41
    %64 = vmatpush.msra.mxu0 %v40
    %65 = vmatpush.msra.mxu0 %v39
    %66 = vmatmul.f32.gmra.mxu0 %v45
    %v67 = vpop.f32.mrf.mxu0
    %v68 = vadd.f32 0.0, %v67
    %69 = vmatmul.f32.gmra.mxu0 %v48
    %v70 = vpop.f32.mrf.mxu0
    %v71 = vadd.f32 0.0, %v70
    %72 = vdwg.mxu0
    %v74 = vsel %vm43, %v31, 0
    %v77 = vsel %vm43, %v32, 0
    %79 = vmatpush.msra.mxu0 0.0
    %80 = vmatpush.msra.mxu0 0.0
    %81 = vmatpush.msra.mxu0 0.0
    %82 = vmatpush.msra.mxu0 0.0
    %83 = vmatpush.msra.mxu0 0.0
    %84 = vmatpush.msra.mxu0 0.0
    %85 = vmatpush.msra.mxu0 0.0
    %86 = vmatpush.msra.mxu0 0.0
    %87 = vmatpush.msra.mxu0 0.0
    %88 = vmatpush.msra.mxu0 0.0
    %89 = vmatpush.msra.mxu0 0.0
    %90 = vmatpush.msra.mxu0 0.0
    %91 = vmatpush.msra.mxu0 %v38
    %92 = vmatpush.msra.mxu0 %v37
    %93 = vmatpush.msra.mxu0 %v36
    %94 = vmatpush.msra.mxu0 %v35
    %95 = vmatmul.f32.gmra.mxu0 %v74
    %v96 = vpop.f32.mrf.mxu0
    %v97 = vadd.f32 %v68, %v96
    %98 = vmatmul.f32.gmra.mxu0 %v77
    %v99 = vpop.f32.mrf.mxu0
    %v100 = vadd.f32 %v71, %v99
    %101 = vdwg.mxu0
    %v102 = vld [vmem:[%s4] sm:$0x1]
    %v104 = vperm.slane %v102, 0
    %v106 = vadd.f32 %v97, %v104
    %v107 = vadd.f32 %v100, %v104
    %v108 = vtanh.pop %v106
    %v109 = vtanh.pop %v107
    %v110 = vld [vmem:[%s5] sm:$0x1]
    %s111 = sld [smem:[#allocation2]]
    %v113 = vperm.slane %v110, 0
    %v115 = vmul.f32 %v108, %v113
    %v116 = vmul.f32 %v109, %v113
    %117 = vadd.xlane.f32.xlu0 %v115
    %v118 = vpop.xlane.xlu0 %117
    %119 = vadd.xlane.f32.xlu0 %v116
    %v120 = vpop.xlane.xlu0 %119
    %v121 = vstv %s111
    %v122 = vadd.f32 %v118, %v121
    %v123 = vadd.f32 %v120, %v121
    %v124 = vxor.u32 %v122, 2147483648
    %v125 = vxor.u32 %v123, 2147483648
    %v126 = vmul.f32 %v124, 1.442695
    %v127 = vpow.pop %v126
    %v128 = vmul.f32 %v125, 1.442695
    %v129 = vpow.pop %v128
    %v130 = vadd.f32 %v127, 1.0
    %v131 = vadd.f32 %v129, 1.0
    %v132 = vrcp.pop %v130
    %v133 = vmul.f32 %v130, %v132
    %v134 = vsub.f32 1.0, %v133
    %v135 = vmul.f32 %v132, %v134
    %v136 = vadd.f32 %v132, %v135
    %vm137 = vweird.f32 %v130
    %vm138 = vweird.f32 %v132
    %vm139 = vmor %vm137, %vm138
    %v140 = vsel %vm139, %v132, %v136
    %v141 = vand.u32 2147483647, %v130
    %vm142 = vcmp.eq.f32.partialorder %v141, 8.507059e+37
    %v143 = vand.u32 %v130, 2147483648
    %v144 = vor.u32 1.1754944e-38, %v143
    %v145 = vsel %vm142, %v144, %v140
    %v146 = vmul.f32 1.0, %v145
    %v147 = vrcp.pop %v131
    %v148 = vmul.f32 %v131, %v147
    %v149 = vsub.f32 1.0, %v148
    %v150 = vmul.f32 %v147, %v149
    %v151 = vadd.f32 %v147, %v150
    %vm152 = vweird.f32 %v131
    %vm153 = vweird.f32 %v147
    %vm154 = vmor %vm152, %vm153
    %v155 = vsel %vm154, %v147, %v151
    %v156 = vand.u32 2147483647, %v131
    %vm157 = vcmp.eq.f32.partialorder %v156, 8.507059e+37
    %v158 = vand.u32 %v131, 2147483648
    %v159 = vor.u32 1.1754944e-38, %v158
    %v160 = vsel %vm157, %v159, %v155
    %v161 = vmul.f32 1.0, %v160
    %v162 = vmul.f32 %v146, %v31
    %v163 = vmul.f32 %v161, %v32
    %v164 = vsub.f32 1.0, %v146
    %v165 = vsub.f32 1.0, %v161
    %v166 = vmul.f32 %v164, %v33
    %v167 = vmul.f32 %v165, %v34
    %v168 = vadd.f32 %v162, %v166
    %v169 = vadd.f32 %v163, %v167
    %170 = vst.msk [vmem:[#allocation3] sm:$0xff] %vm43, %v168
    %171 = vst.msk [vmem:[#allocation3 + $0x8] sm:$0xff] %vm43, %v169
    %172 = vmatpush.xpose.msra.mxu0 0.0
    %173 = vmatpush.xpose.msra.mxu0 0.0
    %174 = vmatpush.xpose.msra.mxu0 0.0
    %175 = vmatpush.xpose.msra.mxu0 0.0
    %176 = vmatpush.xpose.msra.mxu0 0.0
    %177 = vmatpush.xpose.msra.mxu0 0.0
    %178 = vmatpush.xpose.msra.mxu0 0.0
    %179 = vmatpush.xpose.msra.mxu0 0.0
    %180 = vmatpush.xpose.msra.mxu0 0.0
    %181 = vmatpush.xpose.msra.mxu0 0.0
    %182 = vmatpush.xpose.msra.mxu0 0.0
    %183 = vmatpush.xpose.msra.mxu0 0.0
    %184 = vmatpush.xpose.msra.mxu0 0.0
    %185 = vmatpush.xpose.msra.mxu0 0.0
    %186 = vmatpush.xpose.msra.mxu0 %v109
    %187 = vmatpush.xpose.msra.mxu0 %v108
    %188 = vmatmul.f32.gmra.mxu0 %v110
    %v189 = vpop.f32.mrf.mxu0
    %v190 = vadd.f32 %v121, %v189
    %191 = vdwg.mxu0
    %v192 = vxor.u32 %v190, 2147483648
    %v193 = vmul.f32 %v192, 1.442695
    %v194 = vpow.pop %v193
    %v195 = vadd.f32 %v194, 1.0
    %v196 = vrcp.pop %v195
    %v197 = vmul.f32 %v195, %v196
    %v198 = vsub.f32 1.0, %v197
    %v199 = vmul.f32 %v196, %v198
    %v200 = vadd.f32 %v196, %v199
    %vm201 = vweird.f32 %v195
    %vm202 = vweird.f32 %v196
    %vm203 = vmor %vm201, %vm202
    %v204 = vsel %vm203, %v196, %v200
    %v205 = vand.u32 2147483647, %v195
    %vm206 = vcmp.eq.f32.partialorder %v205, 8.507059e+37
    %v207 = vand.u32 %v195, 2147483648
    %v208 = vor.u32 1.1754944e-38, %v207
    %v209 = vsel %vm206, %v208, %v204
    %v210 = vmul.f32 1.0, %v209
    %vm211 = vcmask 122880
    %212 = vst.msk [vmem:[#allocation5] sm:$0x1] %vm211, %v210
    %v213 = vsub.f32 1.0, %v210
    %214 = vst.msk [vmem:[#allocation5 + $0x1] sm:$0x1] %vm211, %v213
    // Predicated region
    $region30: #{residual_forward.1} parent=1 // pred_check
      _
    $region31: #{residual_forward.1} parent=1 // pred_check_branch
      %216 = sbr.rel (0) target = $region33
    $region32: #{residual_forward.1} parent=1 // pred_region
      %218 = vsyncadd [#allocation4], 0
      %s219 = sshll.u32 [#allocation3], 4
      %s220 = int_to_ptr.vmem [resolvable:$true] %s219
      %s221 = sshll.u32 %s7, 4
      %s222 = int_to_ptr.hbm [resolvable:$true] %s221
      %227 = dma.vmem_to_hbm [thread:$0]  %s220, 256, %s222, [#allocation4], 128, 128, 8
    $region33: #{residual_forward.1} parent=1 // pred_fallthru
      _
    // Predicated region
    $region34: #{residual_forward.1} parent=1 // pred_check
      _
    $region35: #{residual_forward.1} parent=1 // pred_check_branch
      %229 = sbr.rel (0) target = $region37
    $region36: #{residual_forward.1} parent=1 // pred_region
      %231 = vsyncadd [#allocation6], 0
      %s233 = sshll.u32 [#allocation5], 4
      %s234 = int_to_ptr.vmem [resolvable:$true] %s233
      %s235 = sshll.u32 %s8, 4
      %s236 = int_to_ptr.hbm [resolvable:$true] %s235
      %238 = dma.vmem_to_hbm [thread:$0]  %s234, 32, %s236, [#allocation6]
    $region37: #{residual_forward.1} parent=1 // pred_fallthru
      _
    // Predicated region
    $region38: #{residual_forward.1} parent=1 // pred_check
      _
    $region39: #{residual_forward.1} parent=1 // pred_check_branch
      %240 = sbr.rel (0) target = $region41
    $region40: #{residual_forward.1} parent=1 // pred_region
      %242 = dma.done [#allocation4], 256
    $region41: #{residual_forward.1} parent=1 // pred_fallthru
      _
    // Predicated region
    $region42: #{residual_forward.1} parent=1 // pred_check
      _
    $region43: #{residual_forward.1} parent=1 // pred_check_branch
      %244 = sbr.rel (0) target = $region45
    $region44: #{residual_forward.1} parent=1 // pred_region
      %246 = dma.done [#allocation6], 32
    $region45: #{residual_forward.1} parent=1 // pred_fallthru
      _
    %247 = vsyncpa [#allocation4], 1
    %248 = vsyncpa [#allocation6], 1

</llo_original>
